<compile_context>
chip_gen: v7x
topology: tpu7x:2x2x1
jax: 0.10.0
libtpu: 0.0.40
codegen_flags: <defaults>
</compile_context>

<pallas_src>
import functools

import jax
import jax.numpy as jnp
from jax.experimental import pallas as pl
from jax.experimental.pallas import tpu as pltpu


def classification_head_kernel(feat_hbm, w1_ref, b1_ref, w2_ref, b2_ref, out_hbm,
                               xbuf, obuf, in_sem, out_sem, *, batch, tile_b):
    """ClassificationHead forward for one batch tile (token-0 gather fused via DMA).

    feat_hbm: [B, T, Din]  fingerprint tokens, left in HBM (pl.ANY)
    w1_ref:   [Din, Dout]  dense weight, pre-transposed to [in, out], bf16 (resident)
    b1_ref:   [1, Dout]    dense bias, f32
    w2_ref:   [Dout, Cp]   out_proj weight, pre-transposed + class axis padded, bf16
    b2_ref:   [1, Cp]      out_proj bias (padded), f32
    out_hbm:  [B, Cp]      logits (padded class axis), f32, HBM (pl.ANY)
    xbuf:     [tile_b, Din] VMEM staging buffer (input dtype)
    obuf:     [tile_b, Cp]  VMEM output buffer (f32)
    """
    i = pl.program_id(0)
    # Clamp so a ragged last tile re-reads/re-writes a few rows (identical values)
    # instead of running off the end of the batch -- no wrapper-side padding needed.
    start = jnp.minimum(i * tile_b, batch - tile_b)

    # Fused token-0 gather: strided HBM->VMEM DMA of features[start:start+tile_b, 0, :].
    cp_in = pltpu.make_async_copy(feat_hbm.at[pl.ds(start, tile_b), 0, :], xbuf, in_sem)
    cp_in.start()
    cp_in.wait()

    # dropout is identity in eval mode
    x = xbuf[...].astype(jnp.bfloat16)                                       # [tile_b, Din]
    h = jnp.tanh(                                                            # f32 bias + tanh
        jnp.dot(x, w1_ref[...], preferred_element_type=jnp.float32) + b1_ref[...]
    )                                                                        # [tile_b, Dout] f32
    # Second (tiny) matmul kept in f32 activations for accuracy; bf16 weights upcast here.
    obuf[...] = (
        jnp.dot(h, w2_ref[...].astype(jnp.float32), preferred_element_type=jnp.float32)
        + b2_ref[...]
    )                                                                        # [tile_b, Cp] f32

    cp_out = pltpu.make_async_copy(obuf, out_hbm.at[pl.ds(start, tile_b), :], out_sem)
    cp_out.start()
    cp_out.wait()


def prepare_head_params(dense_w, dense_b, out_proj_w, out_proj_b):
    """One-time (model-load) preprocessing of the PyTorch-layout Linear parameters.

    dense_w:    [Dout, Din]   (nn.Linear weight, [out, in])
    dense_b:    [Dout]
    out_proj_w: [C, Dout]
    out_proj_b: [C]
    """
    d_out, d_in = dense_w.shape
    num_classes = out_proj_w.shape[0]
    c_pad = max(128, ((num_classes + 127) // 128) * 128)

    w1_t = jnp.asarray(dense_w, jnp.float32).T.astype(jnp.bfloat16)         # [Din, Dout]
    b1 = jnp.asarray(dense_b, jnp.float32).reshape(1, d_out)                # [1, Dout]
    w2_t = (
        jnp.zeros((d_out, c_pad), jnp.bfloat16)
        .at[:, :num_classes]
        .set(jnp.asarray(out_proj_w, jnp.float32).T.astype(jnp.bfloat16))
    )                                                                       # [Dout, Cp]
    b2 = (
        jnp.zeros((1, c_pad), jnp.float32)
        .at[:, :num_classes]
        .set(jnp.asarray(out_proj_b, jnp.float32))
    )                                                                       # [1, Cp]
    return {"w1_t": w1_t, "b1": b1, "w2_t": w2_t, "b2": b2}


def classification_head(features, head_params, num_classes):
    """features: [B, T, Din] (f32 or bf16).  Returns logits [B, C] f32."""
    w1_t, b1 = head_params["w1_t"], head_params["b1"]
    w2_t, b2 = head_params["w2_t"], head_params["b2"]
    d_in, d_out = w1_t.shape
    c_pad = w2_t.shape[1]

    if features.ndim == 2:          # already [B, Din] -> give it a trivial token axis
        features = features[:, None, :]
    B = features.shape[0]

    # Launch-bound head: one tile covers the whole batch up to 256 rows (single grid
    # step on v5e/v6e); beyond that, 256-row tiles (full MXU M-pass on v6e/v7x) marked
    # "parallel" so v7x's second TensorCore can take half of them.
    tile_b = B if B <= 256 else 256
    num_tiles = pl.cdiv(B, tile_b)

    feat_bytes = jnp.dtype(features.dtype).itemsize
    cost = pl.CostEstimate(
        flops=2 * B * d_in * d_out + 2 * B * d_out * c_pad,
        transcendentals=B * d_out,
        bytes_accessed=(
            B * d_in * feat_bytes     # token-0 features only
            + w1_t.size * 2           # bf16 weights
            + w2_t.size * 2
            + b1.size * 4
            + b2.size * 4
            + B * c_pad * 4           # logits out (f32)
        ),
    )

    kernel = functools.partial(classification_head_kernel, batch=B, tile_b=tile_b)

    logits_padded = pl.pallas_call(
        kernel,
        out_shape=jax.ShapeDtypeStruct((B, c_pad), jnp.float32),
        grid=(num_tiles,),
        in_specs=[
            pl.BlockSpec(memory_space=pl.ANY),               # full [B, T, Din] stays in HBM
            pl.BlockSpec((d_in, d_out), lambda i: (0, 0)),   # resident bf16 weights
            pl.BlockSpec((1, d_out), lambda i: (0, 0)),
            pl.BlockSpec((d_out, c_pad), lambda i: (0, 0)),
            pl.BlockSpec((1, c_pad), lambda i: (0, 0)),
        ],
        out_specs=pl.BlockSpec(memory_space=pl.ANY),         # written by manual DMA
        scratch_shapes=[
            pltpu.VMEM((tile_b, d_in), features.dtype),      # token-0 staging buffer
            pltpu.VMEM((tile_b, c_pad), jnp.float32),        # logits buffer (lane-dense)
            pltpu.SemaphoreType.DMA(()),
            pltpu.SemaphoreType.DMA(()),
        ],
        compiler_params=pltpu.CompilerParams(
            dimension_semantics=("parallel",),
        ),
        cost_estimate=cost,
    )(features, w1_t, b1, w2_t, b2)

    # Mandatory: never expose the zero-padded class columns.
    return logits_padded[:, :num_classes]


def graphsgpt_forward(fingerprint_tokens, head_params, num_classes):
    """Mirrors GraphsGPT.forward after encode_to_fingerprints (head only)."""
    logit_output = classification_head(fingerprint_tokens, head_params, num_classes)
    return {"logit_output": logit_output}


if __name__ == "__main__":
    # Module-consistent small shapes: input_dim = inner_dim = 512 (fixed by GraphsGPT),
    # task 'tox21' -> num_classes = 12.
    B, T, D = 8, 8, 512
    NUM_CLASSES = 12

    key = jax.random.PRNGKey(0)
    k_feat, k_w1, k_b1, k_w2, k_b2 = jax.random.split(key, 5)

    # Synthetic fingerprint tokens (stand-in for encode_to_fingerprints output).
    fingerprint_tokens = jax.random.normal(k_feat, (B, T, D), dtype=jnp.float32)

    # Deterministic parameter init (PyTorch nn.Linear layout: weight [out, in]).
    bound1 = 1.0 / (D ** 0.5)
    raw_params = {
        "dense_w": jax.random.uniform(k_w1, (D, D), jnp.float32, -bound1, bound1),
        "dense_b": jax.random.uniform(k_b1, (D,), jnp.float32, -bound1, bound1),
        "out_proj_w": jax.random.uniform(k_w2, (NUM_CLASSES, D), jnp.float32, -bound1, bound1),
        "out_proj_b": jax.random.uniform(k_b2, (NUM_CLASSES,), jnp.float32, -bound1, bound1),
    }

    # One-time weight preprocessing (transpose / pad / bf16 cast) — off the hot path.
    head_params = prepare_head_params(
        raw_params["dense_w"], raw_params["dense_b"],
        raw_params["out_proj_w"], raw_params["out_proj_b"],
    )

    out = graphsgpt_forward(fingerprint_tokens, head_params, NUM_CLASSES)
    logits = jax.block_until_ready(out["logit_output"])
    assert logits.shape == (B, NUM_CLASSES), logits.shape

    # Pure-JAX f32 reference of the ClassificationHead (eval-mode: dropout = identity).
    x0 = fingerprint_tokens[:, 0, :]
    ref = (
        jnp.tanh(x0 @ raw_params["dense_w"].T + raw_params["dense_b"])
        @ raw_params["out_proj_w"].T
        + raw_params["out_proj_b"]
    )
    # bf16 operands in the first matmul (f32 accumulation, f32 second matmul) -> loose tol.
    assert jnp.allclose(logits, ref, atol=2e-2, rtol=2e-2), float(jnp.max(jnp.abs(logits - ref)))

    print("KERNEL_OK")
</pallas_src>

<mosaic_0001>
module attributes {stable_mosaic.version = 11 : i64} {
  func.func @classification_head_kernel(%arg0: i32, %arg1: memref<8x8x512xf32, #tpu.memory_space<any>>, %arg2: memref<512x512xbf16, #tpu.memory_space<vmem>>, %arg3: memref<1x512xf32, #tpu.memory_space<vmem>>, %arg4: memref<512x128xbf16, #tpu.memory_space<vmem>>, %arg5: memref<1x128xf32, #tpu.memory_space<vmem>>, %arg6: memref<8x128xf32, #tpu.memory_space<any>>, %arg7: memref<8x512xf32, #tpu.memory_space<vmem>>, %arg8: memref<8x128xf32, #tpu.memory_space<vmem>>, %arg9: memref<!tpu.dma_semaphore, #tpu.memory_space<semaphore_mem>>, %arg10: memref<!tpu.dma_semaphore, #tpu.memory_space<semaphore_mem>>) attributes {dimension_semantics = [#tpu.dimension_semantics<parallel>], iteration_bounds = array<i64: 1>, scalar_prefetch = 0 : i64, scratch_operands = 4 : i64, tpu.core_type = #tpu.core_type<tc>, window_params = [{}, {pipeline_mode = #tpu.pipeline_mode<synchronous>, transform_indices = @transform_1, window_bounds = array<i64: 512, 512>}, {pipeline_mode = #tpu.pipeline_mode<synchronous>, transform_indices = @transform_2, window_bounds = array<i64: 1, 512>}, {pipeline_mode = #tpu.pipeline_mode<synchronous>, transform_indices = @transform_3, window_bounds = array<i64: 512, 128>}, {pipeline_mode = #tpu.pipeline_mode<synchronous>, transform_indices = @transform_4, window_bounds = array<i64: 1, 128>}, {}]} {
    %c8_i32 = arith.constant 8 : i32
    %0 = arith.muli %arg0, %c8_i32 : i32
    %c0_i32 = arith.constant 0 : i32
    %1 = arith.minsi %0, %c0_i32 : i32
    %c0_i32_0 = arith.constant 0 : i32
    %c0_i32_1 = arith.constant 0 : i32
    %2 = tpu.memref_slice %arg1[%1, %c0_i32_0, %c0_i32_1] : memref<8x8x512xf32, #tpu.memory_space<any>> -> memref<8x1x512xf32, #tpu.memory_space<any>>
    %3 = tpu.memref_squeeze %2 : memref<8x1x512xf32, #tpu.memory_space<any>> -> memref<8x512xf32, #tpu.memory_space<any>>
    tpu.enqueue_dma source(%3 : memref<8x512xf32, #tpu.memory_space<any>>) target(%arg7 : memref<8x512xf32, #tpu.memory_space<vmem>>) target_semaphore(%arg9 : memref<!tpu.dma_semaphore, #tpu.memory_space<semaphore_mem>>)
    %c0_i32_2 = arith.constant 0 : i32
    %c0_i32_3 = arith.constant 0 : i32
    %4 = tpu.memref_slice %arg1[%1, %c0_i32_2, %c0_i32_3] : memref<8x8x512xf32, #tpu.memory_space<any>> -> memref<8x1x512xf32, #tpu.memory_space<any>>
    %5 = tpu.memref_squeeze %4 : memref<8x1x512xf32, #tpu.memory_space<any>> -> memref<8x512xf32, #tpu.memory_space<any>>
    tpu.wait_dma2 semaphore(%arg9 : memref<!tpu.dma_semaphore, #tpu.memory_space<semaphore_mem>>) src(%5 : memref<8x512xf32, #tpu.memory_space<any>>) dst(%arg7 : memref<8x512xf32, #tpu.memory_space<vmem>>)
    %c0 = arith.constant 0 : index
    %c0_4 = arith.constant 0 : index
    %6 = vector.load %arg7[%c0, %c0_4] : memref<8x512xf32, #tpu.memory_space<vmem>>, vector<8x512xf32>
    %7 = arith.truncf %6 : vector<8x512xf32> to vector<8x512xbf16>
    %c0_5 = arith.constant 0 : index
    %c0_6 = arith.constant 0 : index
    %8 = vector.load %arg2[%c0_5, %c0_6] : memref<512x512xbf16, #tpu.memory_space<vmem>>, vector<512x512xbf16>
    %cst = arith.constant dense<0.000000e+00> : vector<8x512xf32>
    %9 = tpu.matmul %7, %8, %cst {dimension_numbers = #tpu.dot_dimension_numbers<[1], [0], [0], [1], [0, 0, 1, 1], [], []>} : vector<8x512xbf16>, vector<512x512xbf16>, vector<8x512xf32> -> vector<8x512xf32>
    %c0_7 = arith.constant 0 : index
    %c0_8 = arith.constant 0 : index
    %10 = vector.load %arg3[%c0_7, %c0_8] : memref<1x512xf32, #tpu.memory_space<vmem>>, vector<1x512xf32>
    %11 = vector.broadcast %10 : vector<1x512xf32> to vector<8x512xf32>
    %12 = arith.addf %9, %11 : vector<8x512xf32>
    %13 = math.tanh %12 : vector<8x512xf32>
    %c0_9 = arith.constant 0 : index
    %c0_10 = arith.constant 0 : index
    %14 = vector.load %arg4[%c0_9, %c0_10] : memref<512x128xbf16, #tpu.memory_space<vmem>>, vector<512x128xbf16>
    %15 = arith.extf %14 : vector<512x128xbf16> to vector<512x128xf32>
    %cst_11 = arith.constant dense<0.000000e+00> : vector<8x128xf32>
    %16 = tpu.matmul %13, %15, %cst_11 {dimension_numbers = #tpu.dot_dimension_numbers<[1], [0], [0], [1], [0, 0, 1, 1], [], []>} : vector<8x512xf32>, vector<512x128xf32>, vector<8x128xf32> -> vector<8x128xf32>
    %c0_12 = arith.constant 0 : index
    %c0_13 = arith.constant 0 : index
    %17 = vector.load %arg5[%c0_12, %c0_13] : memref<1x128xf32, #tpu.memory_space<vmem>>, vector<1x128xf32>
    %18 = vector.broadcast %17 : vector<1x128xf32> to vector<8x128xf32>
    %19 = arith.addf %16, %18 : vector<8x128xf32>
    %c0_14 = arith.constant 0 : index
    %c0_15 = arith.constant 0 : index
    %20 = vector.load %arg8[%c0_14, %c0_15] : memref<8x128xf32, #tpu.memory_space<vmem>>, vector<8x128xf32>
    tpu.vector_store %arg8[%c0_14, %c0_15], %19 {strides = array<i32>} : memref<8x128xf32, #tpu.memory_space<vmem>>, vector<8x128xf32>,
    %c0_i32_16 = arith.constant 0 : i32
    %21 = tpu.memref_slice %arg6[%1, %c0_i32_16] : memref<8x128xf32, #tpu.memory_space<any>> -> memref<8x128xf32, #tpu.memory_space<any>>
    tpu.enqueue_dma source(%arg8 : memref<8x128xf32, #tpu.memory_space<vmem>>) target(%21 : memref<8x128xf32, #tpu.memory_space<any>>) target_semaphore(%arg10 : memref<!tpu.dma_semaphore, #tpu.memory_space<semaphore_mem>>)
    %c0_i32_17 = arith.constant 0 : i32
    %22 = tpu.memref_slice %arg6[%1, %c0_i32_17] : memref<8x128xf32, #tpu.memory_space<any>> -> memref<8x128xf32, #tpu.memory_space<any>>
    tpu.wait_dma2 semaphore(%arg10 : memref<!tpu.dma_semaphore, #tpu.memory_space<semaphore_mem>>) src(%arg8 : memref<8x128xf32, #tpu.memory_space<vmem>>) dst(%22 : memref<8x128xf32, #tpu.memory_space<any>>)
    return
  }
  func.func @transform_1(%arg0: i32) -> (i32, i32) {
    %c0_i32 = arith.constant 0 : i32
    %c0_i32_0 = arith.constant 0 : i32
    %c0_i32_1 = arith.constant 0 : i32
    return %c0_i32, %c0_i32_0 : i32, i32
  }
  func.func @transform_2(%arg0: i32) -> (i32, i32) {
    %c0_i32 = arith.constant 0 : i32
    %c0_i32_0 = arith.constant 0 : i32
    %c0_i32_1 = arith.constant 0 : i32
    return %c0_i32, %c0_i32_0 : i32, i32
  }
  func.func @transform_3(%arg0: i32) -> (i32, i32) {
    %c0_i32 = arith.constant 0 : i32
    %c0_i32_0 = arith.constant 0 : i32
    %c0_i32_1 = arith.constant 0 : i32
    return %c0_i32, %c0_i32_0 : i32, i32
  }
  func.func @transform_4(%arg0: i32) -> (i32, i32) {
    %c0_i32 = arith.constant 0 : i32
    %c0_i32_0 = arith.constant 0 : i32
    %c0_i32_1 = arith.constant 0 : i32
    return %c0_i32, %c0_i32_0 : i32, i32
  }
}

</mosaic_0001>

<llo_original>
// kernel: tpu_custom_call.1
$region0: #{tpu_custom_call.1}
  #allocation0 [shape = 'u32[]', space=smem, size = 0x4, offset = 0x4, fixed_abs, tag = 'smem constant byte address 0x4 - core index']
  #allocation1 [shape = 'u32[144,128]{1,0:T(1,128)}', space=vmem, size = 0x12000, scoped, tag = 'internal scratch']
  #allocation2 [shape = 'f32[8,512]{1,0:T(8,128)}', space=vmem, size = 0x4000, scoped, tag = 'scratch operand']
  #allocation3 [shape = 'f32[8,128]{1,0:T(8,128)}', space=vmem, size = 0x1000, scoped, tag = 'scratch operand']
  #allocation4 [shape = 's32[1]{0}', space=sflag, size = 0x4, scoped, tag = 'scratch operand']
  #allocation5 [shape = 's32[1]{0}', space=sflag, size = 0x4, scoped, tag = 'scratch operand']
  #allocation10 [shape = 's32[]', space=sflag, size = 0x4, offset = 0, fixed_abs, tag = 'sflag constant byte address 0x0 - dummy sync flag']
  #allocation12 [shape = 's32[]', space=sflag, size = 0x4, offset = 0, fixed_abs, tag = 'sflag constant byte address 0x0 - dummy sync flag']
  #allocation13 [shape = 's32[]', space=sflag, size = 0x4, offset = 0, fixed_abs, tag = 'sflag constant byte address 0x0 - dummy sync flag']
  #allocation14 [shape = 'u32[]', space=smem, size = 0x4, offset = 0x44, fixed_abs, tag = 'smem constant byte address 0x44 - assertion arg 0']
  #allocation15 [shape = 'u32[]', space=smem, size = 0x4, offset = 0x48, fixed_abs, tag = 'smem constant byte address 0x48 - assertion arg 1']
  %s0 = inlined_call_operand.hbm [shape: f32[8,8,512], index: 0, kind: input, shape index: {}]
  %s1 = inlined_call_operand.hbm [shape: bf16[512,512], index: 1, kind: input, shape index: {}]
  %s2 = inlined_call_operand.vmem [shape: f32[1,512], index: 2, kind: input, shape index: {}]
  %s3 = inlined_call_operand.hbm [shape: bf16[512,128], index: 3, kind: input, shape index: {}]
  %s4 = inlined_call_operand.vmem [shape: f32[1,128], index: 4, kind: input, shape index: {}]
  %s5 = inlined_call_operand.hbm [shape: f32[8,128], index: 5, kind: output, shape index: {}]
  %s6 = sld [smem:[#allocation0]]
  $region30: #{tpu_custom_call.1} parent=0
    _
  %s8 = ssub.s32 1, %s6
  %s9 = scalar_select 0, %s8, %s6
  $region1: #{tpu_custom_call.1} parent=0
    #allocation6 [shape = 'u8[524288]{0}', space=vmem, size = 0x80000, scoped, tag = 'input window, operand 1, single buffered']
    #allocation7 [shape = 's32[1]{0}', space=sflag, size = 0x4, scoped, tag = 'scoped memory for tpu_custom_call.1']
    #allocation8 [shape = 'u8[131072]{0}', space=vmem, size = 0x20000, scoped, tag = 'input window, operand 3, single buffered']
    #allocation9 [shape = 's32[1]{0}', space=sflag, size = 0x4, scoped, tag = 'scoped memory for tpu_custom_call.1']
    #allocation11 [shape = 'u32[6]{0}', space=smem, size = 0x18, scoped, tag = 'DMA stride descriptor']
    %10 = vsyncpa [#allocation7], 0
    %11 = vsyncpa [#allocation9], 0
    // Predicated region
    $region2: #{tpu_custom_call.1} parent=1 // pred_check
      _
    $region3: #{tpu_custom_call.1} parent=1 // pred_check_branch
      %13 = sbr.rel (0) target = $region5
    $region4: #{tpu_custom_call.1} parent=1 // pred_region
      %s15 = ssub.s32 16384, 16384
      %16 = vsyncadd [#allocation7], %s15
      %s17 = sshll.u32 [#allocation6], 4
      %s18 = int_to_ptr.vmem [resolvable:$true] %s17
      %23 = dma.hbm_to_vmem [thread:$0]  %s1, 16384, %s18, [#allocation7], 256, 256, 16
    $region5: #{tpu_custom_call.1} parent=1 // pred_fallthru
      _
    // Predicated region
    $region6: #{tpu_custom_call.1} parent=1 // pred_check
      _
    $region7: #{tpu_custom_call.1} parent=1 // pred_check_branch
      %25 = sbr.rel (0) target = $region9
    $region8: #{tpu_custom_call.1} parent=1 // pred_region
      _
    $region9: #{tpu_custom_call.1} parent=1 // pred_fallthru
      _
    // Predicated region
    $region10: #{tpu_custom_call.1} parent=1 // pred_check
      _
    $region11: #{tpu_custom_call.1} parent=1 // pred_check_branch
      %27 = sbr.rel (0) target = $region13
    $region12: #{tpu_custom_call.1} parent=1 // pred_region
      %s29 = ssub.s32 4096, 4096
      %30 = vsyncadd [#allocation9], %s29
      %s31 = sshll.u32 [#allocation8], 4
      %s32 = int_to_ptr.vmem [resolvable:$true] %s31
      %37 = dma.hbm_to_vmem [thread:$0]  %s3, 4096, %s32, [#allocation9], 64, 64, 4
    $region13: #{tpu_custom_call.1} parent=1 // pred_fallthru
      _
    // Predicated region
    $region14: #{tpu_custom_call.1} parent=1 // pred_check
      _
    $region15: #{tpu_custom_call.1} parent=1 // pred_check_branch
      %39 = sbr.rel (0) target = $region17
    $region16: #{tpu_custom_call.1} parent=1 // pred_region
      _
    $region17: #{tpu_custom_call.1} parent=1 // pred_fallthru
      _
    // Predicated region
    $region18: #{tpu_custom_call.1} parent=1 // pred_check
      _
    $region19: #{tpu_custom_call.1} parent=1 // pred_check_branch
      %41 = sbr.rel (0) target = $region21
    $region20: #{tpu_custom_call.1} parent=1 // pred_region
      %42 = dma.done [#allocation7], 16384
    $region21: #{tpu_custom_call.1} parent=1 // pred_fallthru
      _
    // Predicated region
    $region22: #{tpu_custom_call.1} parent=1 // pred_check
      _
    $region23: #{tpu_custom_call.1} parent=1 // pred_check_branch
      %44 = sbr.rel (0) target = $region25
    $region24: #{tpu_custom_call.1} parent=1 // pred_region
      %45 = dma.done [#allocation9], 4096
    $region25: #{tpu_custom_call.1} parent=1 // pred_fallthru
      _
    %s46 = smul.u32 0, 8
    %p47 = scmp.lt.s32.totalorder %s46, 0
    %s48 = scalar_select %p47, %s46, 0
    %s49 = smul.u32 %s48, 32
    %s50 = smul.addr %s49, 16
    %s51 = scalar_lea.hbm %s0, %s50
    %s53 = sshll.u32 1, 14
    %s54 = sxor.u32 4294967295, %s53
    %s56 = sld [smem:[#allocation0]]
    %s57 = sadd.s32 2, %s56
    %s59 = sshll.u32 7, 26
    %s60 = sxor.u32 4294967295, %s59
    %s61 = sand.u32 0, %s60
    %s62 = sshll.u32 %s57, 26
    %s63 = sor.u32 %s61, %s62
    %s64 = sshll.u32 [#allocation2], 4
    %s65 = int_to_ptr.vmem [resolvable:$true] %s64
    %68 = sst [smem:[#allocation11]] 128
    %s69 = scalar_lea.smem [#allocation11], 1
    %70 = sst [smem:[%s69]] 128
    %s71 = scalar_lea.smem [#allocation11], 2
    %72 = sst [smem:[%s71]] 8
    %s73 = scalar_lea.smem [#allocation11], 3
    %74 = sst [smem:[%s73]] 512
    %s75 = scalar_lea.smem [#allocation11], 4
    %76 = sst [smem:[%s75]] 16
    %s77 = scalar_lea.smem [#allocation11], 5
    %78 = sst [smem:[%s77]] 1
    %80 = dma.general %s51, 512, %s65, [#allocation4], [#allocation10], [#allocation11], %s63, 0
    %s81 = smul.u32 8, 4
    %s82 = sshll.u32 %s81, 4
    %83 = dma.done [#allocation4], %s82
    %v84 = vld [vmem:[#allocation2] sm:$0xff]
    %v85 = vld [vmem:[#allocation2 + $0x8] sm:$0xff]
    %v86 = vld [vmem:[#allocation2 + $0x10] sm:$0xff]
    %v87 = vld [vmem:[#allocation2 + $0x18] sm:$0xff]
    %v88 = vpack.c.bf16 %v84, %v84
    %v89 = vpack.c.bf16 %v85, %v85
    %v90 = vpack.c.bf16 %v86, %v86
    %v91 = vpack.c.bf16 %v87, %v87
    %v92 = vld [vmem:[#allocation6] sm:$0xff]
    %v93 = vld [vmem:[#allocation6 + $0x8] sm:$0xff]
    %v94 = vld [vmem:[#allocation6 + $0x10] sm:$0xff]
    %v95 = vld [vmem:[#allocation6 + $0x18] sm:$0xff]
    %v96 = vld [vmem:[#allocation6 + $0x20] sm:$0xff]
    %v97 = vld [vmem:[#allocation6 + $0x28] sm:$0xff]
    %v98 = vld [vmem:[#allocation6 + $0x30] sm:$0xff]
    %v99 = vld [vmem:[#allocation6 + $0x38] sm:$0xff]
    %v100 = vld [vmem:[#allocation6 + $0x40] sm:$0xff]
    %v101 = vld [vmem:[#allocation6 + $0x48] sm:$0xff]
    %v102 = vld [vmem:[#allocation6 + $0x50] sm:$0xff]
    %v103 = vld [vmem:[#allocation6 + $0x58] sm:$0xff]
    %v104 = vld [vmem:[#allocation6 + $0x60] sm:$0xff]
    %v105 = vld [vmem:[#allocation6 + $0x68] sm:$0xff]
    %v106 = vld [vmem:[#allocation6 + $0x70] sm:$0xff]
    %v107 = vld [vmem:[#allocation6 + $0x78] sm:$0xff]
    %v108 = vld [vmem:[#allocation6 + $0x80] sm:$0xff]
    %v109 = vld [vmem:[#allocation6 + $0x88] sm:$0xff]
    %v110 = vld [vmem:[#allocation6 + $0x90] sm:$0xff]
    %v111 = vld [vmem:[#allocation6 + $0x98] sm:$0xff]
    %v112 = vld [vmem:[#allocation6 + $0xa0] sm:$0xff]
    %v113 = vld [vmem:[#allocation6 + $0xa8] sm:$0xff]
    %v114 = vld [vmem:[#allocation6 + $0xb0] sm:$0xff]
    %v115 = vld [vmem:[#allocation6 + $0xb8] sm:$0xff]
    %v116 = vld [vmem:[#allocation6 + $0xc0] sm:$0xff]
    %v117 = vld [vmem:[#allocation6 + $0xc8] sm:$0xff]
    %v118 = vld [vmem:[#allocation6 + $0xd0] sm:$0xff]
    %v119 = vld [vmem:[#allocation6 + $0xd8] sm:$0xff]
    %v120 = vld [vmem:[#allocation6 + $0xe0] sm:$0xff]
    %v121 = vld [vmem:[#allocation6 + $0xe8] sm:$0xff]
    %v122 = vld [vmem:[#allocation6 + $0xf0] sm:$0xff]
    %v123 = vld [vmem:[#allocation6 + $0xf8] sm:$0xff]
    %v124 = vld [vmem:[#allocation6 + $0x100] sm:$0xff]
    %v125 = vld [vmem:[#allocation6 + $0x108] sm:$0xff]
    %v126 = vld [vmem:[#allocation6 + $0x110] sm:$0xff]
    %v127 = vld [vmem:[#allocation6 + $0x118] sm:$0xff]
    %v128 = vld [vmem:[#allocation6 + $0x120] sm:$0xff]
    %v129 = vld [vmem:[#allocation6 + $0x128] sm:$0xff]
    %v130 = vld [vmem:[#allocation6 + $0x130] sm:$0xff]
    %v131 = vld [vmem:[#allocation6 + $0x138] sm:$0xff]
    %v132 = vld [vmem:[#allocation6 + $0x140] sm:$0xff]
    %v133 = vld [vmem:[#allocation6 + $0x148] sm:$0xff]
    %v134 = vld [vmem:[#allocation6 + $0x150] sm:$0xff]
    %v135 = vld [vmem:[#allocation6 + $0x158] sm:$0xff]
    %v136 = vld [vmem:[#allocation6 + $0x160] sm:$0xff]
    %v137 = vld [vmem:[#allocation6 + $0x168] sm:$0xff]
    %v138 = vld [vmem:[#allocation6 + $0x170] sm:$0xff]
    %v139 = vld [vmem:[#allocation6 + $0x178] sm:$0xff]
    %v140 = vld [vmem:[#allocation6 + $0x180] sm:$0xff]
    %v141 = vld [vmem:[#allocation6 + $0x188] sm:$0xff]
    %v142 = vld [vmem:[#allocation6 + $0x190] sm:$0xff]
    %v143 = vld [vmem:[#allocation6 + $0x198] sm:$0xff]
    %v144 = vld [vmem:[#allocation6 + $0x1a0] sm:$0xff]
    %v145 = vld [vmem:[#allocation6 + $0x1a8] sm:$0xff]
    %v146 = vld [vmem:[#allocation6 + $0x1b0] sm:$0xff]
    %v147 = vld [vmem:[#allocation6 + $0x1b8] sm:$0xff]
    %v148 = vld [vmem:[#allocation6 + $0x1c0] sm:$0xff]
    %v149 = vld [vmem:[#allocation6 + $0x1c8] sm:$0xff]
    %v150 = vld [vmem:[#allocation6 + $0x1d0] sm:$0xff]
    %v151 = vld [vmem:[#allocation6 + $0x1d8] sm:$0xff]
    %v152 = vld [vmem:[#allocation6 + $0x1e0] sm:$0xff]
    %v153 = vld [vmem:[#allocation6 + $0x1e8] sm:$0xff]
    %v154 = vld [vmem:[#allocation6 + $0x1f0] sm:$0xff]
    %v155 = vld [vmem:[#allocation6 + $0x1f8] sm:$0xff]
    %v156 = vld [vmem:[#allocation6 + $0x200] sm:$0xff]
    %v157 = vld [vmem:[#allocation6 + $0x208] sm:$0xff]
    %v158 = vld [vmem:[#allocation6 + $0x210] sm:$0xff]
    %v159 = vld [vmem:[#allocation6 + $0x218] sm:$0xff]
    %v160 = vld [vmem:[#allocation6 + $0x220] sm:$0xff]
    %v161 = vld [vmem:[#allocation6 + $0x228] sm:$0xff]
    %v162 = vld [vmem:[#allocation6 + $0x230] sm:$0xff]
    %v163 = vld [vmem:[#allocation6 + $0x238] sm:$0xff]
    %v164 = vld [vmem:[#allocation6 + $0x240] sm:$0xff]
    %v165 = vld [vmem:[#allocation6 + $0x248] sm:$0xff]
    %v166 = vld [vmem:[#allocation6 + $0x250] sm:$0xff]
    %v167 = vld [vmem:[#allocation6 + $0x258] sm:$0xff]
    %v168 = vld [vmem:[#allocation6 + $0x260] sm:$0xff]
    %v169 = vld [vmem:[#allocation6 + $0x268] sm:$0xff]
    %v170 = vld [vmem:[#allocation6 + $0x270] sm:$0xff]
    %v171 = vld [vmem:[#allocation6 + $0x278] sm:$0xff]
    %v172 = vld [vmem:[#allocation6 + $0x280] sm:$0xff]
    %v173 = vld [vmem:[#allocation6 + $0x288] sm:$0xff]
    %v174 = vld [vmem:[#allocation6 + $0x290] sm:$0xff]
    %v175 = vld [vmem:[#allocation6 + $0x298] sm:$0xff]
    %v176 = vld [vmem:[#allocation6 + $0x2a0] sm:$0xff]
    %v177 = vld [vmem:[#allocation6 + $0x2a8] sm:$0xff]
    %v178 = vld [vmem:[#allocation6 + $0x2b0] sm:$0xff]
    %v179 = vld [vmem:[#allocation6 + $0x2b8] sm:$0xff]
    %v180 = vld [vmem:[#allocation6 + $0x2c0] sm:$0xff]
    %v181 = vld [vmem:[#allocation6 + $0x2c8] sm:$0xff]
    %v182 = vld [vmem:[#allocation6 + $0x2d0] sm:$0xff]
    %v183 = vld [vmem:[#allocation6 + $0x2d8] sm:$0xff]
    %v184 = vld [vmem:[#allocation6 + $0x2e0] sm:$0xff]
    %v185 = vld [vmem:[#allocation6 + $0x2e8] sm:$0xff]
    %v186 = vld [vmem:[#allocation6 + $0x2f0] sm:$0xff]
    %v187 = vld [vmem:[#allocation6 + $0x2f8] sm:$0xff]
    %v188 = vld [vmem:[#allocation6 + $0x300] sm:$0xff]
    %v189 = vld [vmem:[#allocation6 + $0x308] sm:$0xff]
    %v190 = vld [vmem:[#allocation6 + $0x310] sm:$0xff]
    %v191 = vld [vmem:[#allocation6 + $0x318] sm:$0xff]
    %v192 = vld [vmem:[#allocation6 + $0x320] sm:$0xff]
    %v193 = vld [vmem:[#allocation6 + $0x328] sm:$0xff]
    %v194 = vld [vmem:[#allocation6 + $0x330] sm:$0xff]
    %v195 = vld [vmem:[#allocation6 + $0x338] sm:$0xff]
    %v196 = vld [vmem:[#allocation6 + $0x340] sm:$0xff]
    %v197 = vld [vmem:[#allocation6 + $0x348] sm:$0xff]
    %v198 = vld [vmem:[#allocation6 + $0x350] sm:$0xff]
    %v199 = vld [vmem:[#allocation6 + $0x358] sm:$0xff]
    %v200 = vld [vmem:[#allocation6 + $0x360] sm:$0xff]
    %v201 = vld [vmem:[#allocation6 + $0x368] sm:$0xff]
    %v202 = vld [vmem:[#allocation6 + $0x370] sm:$0xff]
    %v203 = vld [vmem:[#allocation6 + $0x378] sm:$0xff]
    %v204 = vld [vmem:[#allocation6 + $0x380] sm:$0xff]
    %v205 = vld [vmem:[#allocation6 + $0x388] sm:$0xff]
    %v206 = vld [vmem:[#allocation6 + $0x390] sm:$0xff]
    %v207 = vld [vmem:[#allocation6 + $0x398] sm:$0xff]
    %v208 = vld [vmem:[#allocation6 + $0x3a0] sm:$0xff]
    %v209 = vld [vmem:[#allocation6 + $0x3a8] sm:$0xff]
    %v210 = vld [vmem:[#allocation6 + $0x3b0] sm:$0xff]
    %v211 = vld [vmem:[#allocation6 + $0x3b8] sm:$0xff]
    %v212 = vld [vmem:[#allocation6 + $0x3c0] sm:$0xff]
    %v213 = vld [vmem:[#allocation6 + $0x3c8] sm:$0xff]
    %v214 = vld [vmem:[#allocation6 + $0x3d0] sm:$0xff]
    %v215 = vld [vmem:[#allocation6 + $0x3d8] sm:$0xff]
    %v216 = vld [vmem:[#allocation6 + $0x3e0] sm:$0xff]
    %v217 = vld [vmem:[#allocation6 + $0x3e8] sm:$0xff]
    %v218 = vld [vmem:[#allocation6 + $0x3f0] sm:$0xff]
    %v219 = vld [vmem:[#allocation6 + $0x3f8] sm:$0xff]
    %v220 = vld [vmem:[%s2] sm:$0xf]
    %v222 = vlaneseq
    %v223 = vshrl.u32 %v222, 7
    %v224 = vsub.s32 0, %v223
    %v225 = vrot.slane %v220, %v224
    %v226 = vlaneseq
    %v227 = vshrl.u32 %v226, 7
    %v228 = vsub.s32 1, %v227
    %v229 = vrot.slane %v220, %v228
    %v230 = vlaneseq
    %v231 = vshrl.u32 %v230, 7
    %v232 = vsub.s32 2, %v231
    %v233 = vrot.slane %v220, %v232
    %v234 = vlaneseq
    %v235 = vshrl.u32 %v234, 7
    %v236 = vsub.s32 3, %v235
    %v237 = vrot.slane %v220, %v236
    %v370 = vunpack.c.l.b16 %v92
    %v371 = vunpack.c.h.b16 %v92
    %v372 = vunpack.c.l.b16 %v93
    %v373 = vunpack.c.h.b16 %v93
    %v374 = vunpack.c.l.b16 %v94
    %v375 = vunpack.c.h.b16 %v94
    %v376 = vunpack.c.l.b16 %v95
    %v377 = vunpack.c.h.b16 %v95
    %v378 = vunpack.c.l.b16 %v96
    %v379 = vunpack.c.h.b16 %v96
    %v380 = vunpack.c.l.b16 %v97
    %v381 = vunpack.c.h.b16 %v97
    %v382 = vunpack.c.l.b16 %v98
    %v383 = vunpack.c.h.b16 %v98
    %v384 = vunpack.c.l.b16 %v99
    %v385 = vunpack.c.h.b16 %v99
    %v386 = vunpack.c.l.b16 %v100
    %v387 = vunpack.c.h.b16 %v100
    %v388 = vunpack.c.l.b16 %v101
    %v389 = vunpack.c.h.b16 %v101
    %v390 = vunpack.c.l.b16 %v102
    %v391 = vunpack.c.h.b16 %v102
    %v392 = vunpack.c.l.b16 %v103
    %v393 = vunpack.c.h.b16 %v103
    %v394 = vunpack.c.l.b16 %v104
    %v395 = vunpack.c.h.b16 %v104
    %v396 = vunpack.c.l.b16 %v105
    %v397 = vunpack.c.h.b16 %v105
    %v398 = vunpack.c.l.b16 %v106
    %v399 = vunpack.c.h.b16 %v106
    %v400 = vunpack.c.l.b16 %v107
    %v401 = vunpack.c.h.b16 %v107
    %v402 = vunpack.c.l.b16 %v108
    %v403 = vunpack.c.h.b16 %v108
    %v404 = vunpack.c.l.b16 %v109
    %v405 = vunpack.c.h.b16 %v109
    %v406 = vunpack.c.l.b16 %v110
    %v407 = vunpack.c.h.b16 %v110
    %v408 = vunpack.c.l.b16 %v111
    %v409 = vunpack.c.h.b16 %v111
    %v410 = vunpack.c.l.b16 %v112
    %v411 = vunpack.c.h.b16 %v112
    %v412 = vunpack.c.l.b16 %v113
    %v413 = vunpack.c.h.b16 %v113
    %v414 = vunpack.c.l.b16 %v114
    %v415 = vunpack.c.h.b16 %v114
    %v416 = vunpack.c.l.b16 %v115
    %v417 = vunpack.c.h.b16 %v115
    %v418 = vunpack.c.l.b16 %v116
    %v419 = vunpack.c.h.b16 %v116
    %v420 = vunpack.c.l.b16 %v117
    %v421 = vunpack.c.h.b16 %v117
    %v422 = vunpack.c.l.b16 %v118
    %v423 = vunpack.c.h.b16 %v118
    %v424 = vunpack.c.l.b16 %v119
    %v425 = vunpack.c.h.b16 %v119
    %v426 = vunpack.c.l.b16 %v120
    %v427 = vunpack.c.h.b16 %v120
    %v428 = vunpack.c.l.b16 %v121
    %v429 = vunpack.c.h.b16 %v121
    %v430 = vunpack.c.l.b16 %v122
    %v431 = vunpack.c.h.b16 %v122
    %v432 = vunpack.c.l.b16 %v123
    %v433 = vunpack.c.h.b16 %v123
    %v434 = vunpack.c.l.b16 %v124
    %v435 = vunpack.c.h.b16 %v124
    %v436 = vunpack.c.l.b16 %v125
    %v437 = vunpack.c.h.b16 %v125
    %v438 = vunpack.c.l.b16 %v126
    %v439 = vunpack.c.h.b16 %v126
    %v440 = vunpack.c.l.b16 %v127
    %v441 = vunpack.c.h.b16 %v127
    %v442 = vunpack.c.l.b16 %v128
    %v443 = vunpack.c.h.b16 %v128
    %v444 = vunpack.c.l.b16 %v129
    %v445 = vunpack.c.h.b16 %v129
    %v446 = vunpack.c.l.b16 %v130
    %v447 = vunpack.c.h.b16 %v130
    %v448 = vunpack.c.l.b16 %v131
    %v449 = vunpack.c.h.b16 %v131
    %v450 = vunpack.c.l.b16 %v132
    %v451 = vunpack.c.h.b16 %v132
    %v452 = vunpack.c.l.b16 %v133
    %v453 = vunpack.c.h.b16 %v133
    %v454 = vunpack.c.l.b16 %v134
    %v455 = vunpack.c.h.b16 %v134
    %v456 = vunpack.c.l.b16 %v135
    %v457 = vunpack.c.h.b16 %v135
    %v458 = vunpack.c.l.b16 %v136
    %v459 = vunpack.c.h.b16 %v136
    %v460 = vunpack.c.l.b16 %v137
    %v461 = vunpack.c.h.b16 %v137
    %v462 = vunpack.c.l.b16 %v138
    %v463 = vunpack.c.h.b16 %v138
    %v464 = vunpack.c.l.b16 %v139
    %v465 = vunpack.c.h.b16 %v139
    %v466 = vunpack.c.l.b16 %v140
    %v467 = vunpack.c.h.b16 %v140
    %v468 = vunpack.c.l.b16 %v141
    %v469 = vunpack.c.h.b16 %v141
    %v470 = vunpack.c.l.b16 %v142
    %v471 = vunpack.c.h.b16 %v142
    %v472 = vunpack.c.l.b16 %v143
    %v473 = vunpack.c.h.b16 %v143
    %v474 = vunpack.c.l.b16 %v144
    %v475 = vunpack.c.h.b16 %v144
    %v476 = vunpack.c.l.b16 %v145
    %v477 = vunpack.c.h.b16 %v145
    %v478 = vunpack.c.l.b16 %v146
    %v479 = vunpack.c.h.b16 %v146
    %v480 = vunpack.c.l.b16 %v147
    %v481 = vunpack.c.h.b16 %v147
    %v482 = vunpack.c.l.b16 %v148
    %v483 = vunpack.c.h.b16 %v148
    %v484 = vunpack.c.l.b16 %v149
    %v485 = vunpack.c.h.b16 %v149
    %v486 = vunpack.c.l.b16 %v150
    %v487 = vunpack.c.h.b16 %v150
    %v488 = vunpack.c.l.b16 %v151
    %v489 = vunpack.c.h.b16 %v151
    %v490 = vunpack.c.l.b16 %v152
    %v491 = vunpack.c.h.b16 %v152
    %v492 = vunpack.c.l.b16 %v153
    %v493 = vunpack.c.h.b16 %v153
    %v494 = vunpack.c.l.b16 %v154
    %v495 = vunpack.c.h.b16 %v154
    %v496 = vunpack.c.l.b16 %v155
    %v497 = vunpack.c.h.b16 %v155
    %v498 = vunpack.c.l.b16 %v156
    %v499 = vunpack.c.h.b16 %v156
    %v500 = vunpack.c.l.b16 %v157
    %v501 = vunpack.c.h.b16 %v157
    %v502 = vunpack.c.l.b16 %v158
    %v503 = vunpack.c.h.b16 %v158
    %v504 = vunpack.c.l.b16 %v159
    %v505 = vunpack.c.h.b16 %v159
    %v506 = vunpack.c.l.b16 %v160
    %v507 = vunpack.c.h.b16 %v160
    %v508 = vunpack.c.l.b16 %v161
    %v509 = vunpack.c.h.b16 %v161
    %v510 = vunpack.c.l.b16 %v162
    %v511 = vunpack.c.h.b16 %v162
    %v512 = vunpack.c.l.b16 %v163
    %v513 = vunpack.c.h.b16 %v163
    %v514 = vunpack.c.l.b16 %v164
    %v515 = vunpack.c.h.b16 %v164
    %v516 = vunpack.c.l.b16 %v165
    %v517 = vunpack.c.h.b16 %v165
    %v518 = vunpack.c.l.b16 %v166
    %v519 = vunpack.c.h.b16 %v166
    %v520 = vunpack.c.l.b16 %v167
    %v521 = vunpack.c.h.b16 %v167
    %v522 = vunpack.c.l.b16 %v168
    %v523 = vunpack.c.h.b16 %v168
    %v524 = vunpack.c.l.b16 %v169
    %v525 = vunpack.c.h.b16 %v169
    %v526 = vunpack.c.l.b16 %v170
    %v527 = vunpack.c.h.b16 %v170
    %v528 = vunpack.c.l.b16 %v171
    %v529 = vunpack.c.h.b16 %v171
    %v530 = vunpack.c.l.b16 %v172
    %v531 = vunpack.c.h.b16 %v172
    %v532 = vunpack.c.l.b16 %v173
    %v533 = vunpack.c.h.b16 %v173
    %v534 = vunpack.c.l.b16 %v174
    %v535 = vunpack.c.h.b16 %v174
    %v536 = vunpack.c.l.b16 %v175
    %v537 = vunpack.c.h.b16 %v175
    %v538 = vunpack.c.l.b16 %v176
    %v539 = vunpack.c.h.b16 %v176
    %v540 = vunpack.c.l.b16 %v177
    %v541 = vunpack.c.h.b16 %v177
    %v542 = vunpack.c.l.b16 %v178
    %v543 = vunpack.c.h.b16 %v178
    %v544 = vunpack.c.l.b16 %v179
    %v545 = vunpack.c.h.b16 %v179
    %v546 = vunpack.c.l.b16 %v180
    %v547 = vunpack.c.h.b16 %v180
    %v548 = vunpack.c.l.b16 %v181
    %v549 = vunpack.c.h.b16 %v181
    %v550 = vunpack.c.l.b16 %v182
    %v551 = vunpack.c.h.b16 %v182
    %v552 = vunpack.c.l.b16 %v183
    %v553 = vunpack.c.h.b16 %v183
    %v554 = vunpack.c.l.b16 %v184
    %v555 = vunpack.c.h.b16 %v184
    %v556 = vunpack.c.l.b16 %v185
    %v557 = vunpack.c.h.b16 %v185
    %v558 = vunpack.c.l.b16 %v186
    %v559 = vunpack.c.h.b16 %v186
    %v560 = vunpack.c.l.b16 %v187
    %v561 = vunpack.c.h.b16 %v187
    %v562 = vunpack.c.l.b16 %v188
    %v563 = vunpack.c.h.b16 %v188
    %v564 = vunpack.c.l.b16 %v189
    %v565 = vunpack.c.h.b16 %v189
    %v566 = vunpack.c.l.b16 %v190
    %v567 = vunpack.c.h.b16 %v190
    %v568 = vunpack.c.l.b16 %v191
    %v569 = vunpack.c.h.b16 %v191
    %v570 = vunpack.c.l.b16 %v192
    %v571 = vunpack.c.h.b16 %v192
    %v572 = vunpack.c.l.b16 %v193
    %v573 = vunpack.c.h.b16 %v193
    %v574 = vunpack.c.l.b16 %v194
    %v575 = vunpack.c.h.b16 %v194
    %v576 = vunpack.c.l.b16 %v195
    %v577 = vunpack.c.h.b16 %v195
    %v578 = vunpack.c.l.b16 %v196
    %v579 = vunpack.c.h.b16 %v196
    %v580 = vunpack.c.l.b16 %v197
    %v581 = vunpack.c.h.b16 %v197
    %v582 = vunpack.c.l.b16 %v198
    %v583 = vunpack.c.h.b16 %v198
    %v584 = vunpack.c.l.b16 %v199
    %v585 = vunpack.c.h.b16 %v199
    %v586 = vunpack.c.l.b16 %v200
    %v587 = vunpack.c.h.b16 %v200
    %v588 = vunpack.c.l.b16 %v201
    %v589 = vunpack.c.h.b16 %v201
    %v590 = vunpack.c.l.b16 %v202
    %v591 = vunpack.c.h.b16 %v202
    %v592 = vunpack.c.l.b16 %v203
    %v593 = vunpack.c.h.b16 %v203
    %v594 = vunpack.c.l.b16 %v204
    %v595 = vunpack.c.h.b16 %v204
    %v596 = vunpack.c.l.b16 %v205
    %v597 = vunpack.c.h.b16 %v205
    %v598 = vunpack.c.l.b16 %v206
    %v599 = vunpack.c.h.b16 %v206
    %v600 = vunpack.c.l.b16 %v207
    %v601 = vunpack.c.h.b16 %v207
    %v602 = vunpack.c.l.b16 %v208
    %v603 = vunpack.c.h.b16 %v208
    %v604 = vunpack.c.l.b16 %v209
    %v605 = vunpack.c.h.b16 %v209
    %v606 = vunpack.c.l.b16 %v210
    %v607 = vunpack.c.h.b16 %v210
    %v608 = vunpack.c.l.b16 %v211
    %v609 = vunpack.c.h.b16 %v211
    %v610 = vunpack.c.l.b16 %v212
    %v611 = vunpack.c.h.b16 %v212
    %v612 = vunpack.c.l.b16 %v213
    %v613 = vunpack.c.h.b16 %v213
    %v614 = vunpack.c.l.b16 %v214
    %v615 = vunpack.c.h.b16 %v214
    %v616 = vunpack.c.l.b16 %v215
    %v617 = vunpack.c.h.b16 %v215
    %v618 = vunpack.c.l.b16 %v216
    %v619 = vunpack.c.h.b16 %v216
    %v620 = vunpack.c.l.b16 %v217
    %v621 = vunpack.c.h.b16 %v217
    %v622 = vunpack.c.l.b16 %v218
    %v623 = vunpack.c.h.b16 %v218
    %v624 = vunpack.c.l.b16 %v219
    %v625 = vunpack.c.h.b16 %v219
    %v626 = vpack.c.b16 %v374, %v370
    %v627 = vpack.c.b16 %v375, %v371
    %v628 = vpack.c.b16 %v376, %v372
    %v629 = vpack.c.b16 %v377, %v373
    %v630 = vpack.c.b16 %v382, %v378
    %v631 = vpack.c.b16 %v383, %v379
    %v632 = vpack.c.b16 %v384, %v380
    %v633 = vpack.c.b16 %v385, %v381
    %v634 = vpack.c.b16 %v390, %v386
    %v635 = vpack.c.b16 %v391, %v387
    %v636 = vpack.c.b16 %v392, %v388
    %v637 = vpack.c.b16 %v393, %v389
    %v638 = vpack.c.b16 %v398, %v394
    %v639 = vpack.c.b16 %v399, %v395
    %v640 = vpack.c.b16 %v400, %v396
    %v641 = vpack.c.b16 %v401, %v397
    %v642 = vpack.c.b16 %v406, %v402
    %v643 = vpack.c.b16 %v407, %v403
    %v644 = vpack.c.b16 %v408, %v404
    %v645 = vpack.c.b16 %v409, %v405
    %v646 = vpack.c.b16 %v414, %v410
    %v647 = vpack.c.b16 %v415, %v411
    %v648 = vpack.c.b16 %v416, %v412
    %v649 = vpack.c.b16 %v417, %v413
    %v650 = vpack.c.b16 %v422, %v418
    %v651 = vpack.c.b16 %v423, %v419
    %v652 = vpack.c.b16 %v424, %v420
    %v653 = vpack.c.b16 %v425, %v421
    %v654 = vpack.c.b16 %v430, %v426
    %v655 = vpack.c.b16 %v431, %v427
    %v656 = vpack.c.b16 %v432, %v428
    %v657 = vpack.c.b16 %v433, %v429
    %v658 = vpack.c.b16 %v438, %v434
    %v659 = vpack.c.b16 %v439, %v435
    %v660 = vpack.c.b16 %v440, %v436
    %v661 = vpack.c.b16 %v441, %v437
    %v662 = vpack.c.b16 %v446, %v442
    %v663 = vpack.c.b16 %v447, %v443
    %v664 = vpack.c.b16 %v448, %v444
    %v665 = vpack.c.b16 %v449, %v445
    %v666 = vpack.c.b16 %v454, %v450
    %v667 = vpack.c.b16 %v455, %v451
    %v668 = vpack.c.b16 %v456, %v452
    %v669 = vpack.c.b16 %v457, %v453
    %v670 = vpack.c.b16 %v462, %v458
    %v671 = vpack.c.b16 %v463, %v459
    %v672 = vpack.c.b16 %v464, %v460
    %v673 = vpack.c.b16 %v465, %v461
    %v674 = vpack.c.b16 %v470, %v466
    %v675 = vpack.c.b16 %v471, %v467
    %v676 = vpack.c.b16 %v472, %v468
    %v677 = vpack.c.b16 %v473, %v469
    %v678 = vpack.c.b16 %v478, %v474
    %v679 = vpack.c.b16 %v479, %v475
    %v680 = vpack.c.b16 %v480, %v476
    %v681 = vpack.c.b16 %v481, %v477
    %v682 = vpack.c.b16 %v486, %v482
    %v683 = vpack.c.b16 %v487, %v483
    %v684 = vpack.c.b16 %v488, %v484
    %v685 = vpack.c.b16 %v489, %v485
    %v686 = vpack.c.b16 %v494, %v490
    %v687 = vpack.c.b16 %v495, %v491
    %v688 = vpack.c.b16 %v496, %v492
    %v689 = vpack.c.b16 %v497, %v493
    %v690 = vpack.c.b16 %v502, %v498
    %v691 = vpack.c.b16 %v503, %v499
    %v692 = vpack.c.b16 %v504, %v500
    %v693 = vpack.c.b16 %v505, %v501
    %v694 = vpack.c.b16 %v510, %v506
    %v695 = vpack.c.b16 %v511, %v507
    %v696 = vpack.c.b16 %v512, %v508
    %v697 = vpack.c.b16 %v513, %v509
    %v698 = vpack.c.b16 %v518, %v514
    %v699 = vpack.c.b16 %v519, %v515
    %v700 = vpack.c.b16 %v520, %v516
    %v701 = vpack.c.b16 %v521, %v517
    %v702 = vpack.c.b16 %v526, %v522
    %v703 = vpack.c.b16 %v527, %v523
    %v704 = vpack.c.b16 %v528, %v524
    %v705 = vpack.c.b16 %v529, %v525
    %v706 = vpack.c.b16 %v534, %v530
    %v707 = vpack.c.b16 %v535, %v531
    %v708 = vpack.c.b16 %v536, %v532
    %v709 = vpack.c.b16 %v537, %v533
    %v710 = vpack.c.b16 %v542, %v538
    %v711 = vpack.c.b16 %v543, %v539
    %v712 = vpack.c.b16 %v544, %v540
    %v713 = vpack.c.b16 %v545, %v541
    %v714 = vpack.c.b16 %v550, %v546
    %v715 = vpack.c.b16 %v551, %v547
    %v716 = vpack.c.b16 %v552, %v548
    %v717 = vpack.c.b16 %v553, %v549
    %v718 = vpack.c.b16 %v558, %v554
    %v719 = vpack.c.b16 %v559, %v555
    %v720 = vpack.c.b16 %v560, %v556
    %v721 = vpack.c.b16 %v561, %v557
    %v722 = vpack.c.b16 %v566, %v562
    %v723 = vpack.c.b16 %v567, %v563
    %v724 = vpack.c.b16 %v568, %v564
    %v725 = vpack.c.b16 %v569, %v565
    %v726 = vpack.c.b16 %v574, %v570
    %v727 = vpack.c.b16 %v575, %v571
    %v728 = vpack.c.b16 %v576, %v572
    %v729 = vpack.c.b16 %v577, %v573
    %v730 = vpack.c.b16 %v582, %v578
    %v731 = vpack.c.b16 %v583, %v579
    %v732 = vpack.c.b16 %v584, %v580
    %v733 = vpack.c.b16 %v585, %v581
    %v734 = vpack.c.b16 %v590, %v586
    %v735 = vpack.c.b16 %v591, %v587
    %v736 = vpack.c.b16 %v592, %v588
    %v737 = vpack.c.b16 %v593, %v589
    %v738 = vpack.c.b16 %v598, %v594
    %v739 = vpack.c.b16 %v599, %v595
    %v740 = vpack.c.b16 %v600, %v596
    %v741 = vpack.c.b16 %v601, %v597
    %v742 = vpack.c.b16 %v606, %v602
    %v743 = vpack.c.b16 %v607, %v603
    %v744 = vpack.c.b16 %v608, %v604
    %v745 = vpack.c.b16 %v609, %v605
    %v746 = vpack.c.b16 %v614, %v610
    %v747 = vpack.c.b16 %v615, %v611
    %v748 = vpack.c.b16 %v616, %v612
    %v749 = vpack.c.b16 %v617, %v613
    %v750 = vpack.c.b16 %v622, %v618
    %v751 = vpack.c.b16 %v623, %v619
    %v752 = vpack.c.b16 %v624, %v620
    %v753 = vpack.c.b16 %v625, %v621
    %882 = vmatprep.subr.bf16.mxu0 %v627
    %883 = vmatpush1.bf16.msra.mxu0 %v626
    %884 = vmatprep.subr.bf16.mxu0 %v631
    %885 = vmatpush1.bf16.msra.mxu0 %v630
    %886 = vmatprep.subr.bf16.mxu0 %v635
    %887 = vmatpush1.bf16.msra.mxu0 %v634
    %888 = vmatprep.subr.bf16.mxu0 %v639
    %889 = vmatpush1.bf16.msra.mxu0 %v638
    %890 = vmatprep.subr.bf16.mxu0 %v643
    %891 = vmatpush1.bf16.msra.mxu0 %v642
    %892 = vmatprep.subr.bf16.mxu0 %v647
    %893 = vmatpush1.bf16.msra.mxu0 %v646
    %894 = vmatprep.subr.bf16.mxu0 %v651
    %895 = vmatpush1.bf16.msra.mxu0 %v650
    %896 = vmatprep.subr.bf16.mxu0 %v655
    %897 = vmatpush1.bf16.msra.mxu0 %v654
    %898 = vmatprep.subr.bf16.mxu0 %v659
    %899 = vmatpush1.bf16.msra.mxu0 %v658
    %900 = vmatprep.subr.bf16.mxu0 %v663
    %901 = vmatpush1.bf16.msra.mxu0 %v662
    %902 = vmatprep.subr.bf16.mxu0 %v667
    %903 = vmatpush1.bf16.msra.mxu0 %v666
    %904 = vmatprep.subr.bf16.mxu0 %v671
    %905 = vmatpush1.bf16.msra.mxu0 %v670
    %906 = vmatprep.subr.bf16.mxu0 %v675
    %907 = vmatpush1.bf16.msra.mxu0 %v674
    %908 = vmatprep.subr.bf16.mxu0 %v679
    %909 = vmatpush1.bf16.msra.mxu0 %v678
    %910 = vmatprep.subr.bf16.mxu0 %v683
    %911 = vmatpush1.bf16.msra.mxu0 %v682
    %912 = vmatprep.subr.bf16.mxu0 %v687
    %913 = vmatpush1.bf16.msra.mxu0 %v686
    %914 = vmatprep.mubr.bf16.mxu0 %v89
    %915 = vmatmul.mubr.bf16.gmra.mrb[0].mxu0 %v88
    %v916 = vpop.f32.mrb[0].mxu0
    %v917 = vadd.f32 %v225, %v916
    %v918 = vpop.f32.mrb[0].mxu0
    %v919 = vadd.f32 %v229, %v918
    %v920 = vpop.f32.mrb[0].mxu0
    %v921 = vpop.f32.mrb[0].mxu0
    %922 = vdwg.mxu0
    %923 = vmatprep.subr.bf16.mxu0 %v691
    %924 = vmatpush1.bf16.msra.mxu0 %v690
    %925 = vmatprep.subr.bf16.mxu0 %v695
    %926 = vmatpush1.bf16.msra.mxu0 %v694
    %927 = vmatprep.subr.bf16.mxu0 %v699
    %928 = vmatpush1.bf16.msra.mxu0 %v698
    %929 = vmatprep.subr.bf16.mxu0 %v703
    %930 = vmatpush1.bf16.msra.mxu0 %v702
    %931 = vmatprep.subr.bf16.mxu0 %v707
    %932 = vmatpush1.bf16.msra.mxu0 %v706
    %933 = vmatprep.subr.bf16.mxu0 %v711
    %934 = vmatpush1.bf16.msra.mxu0 %v710
    %935 = vmatprep.subr.bf16.mxu0 %v715
    %936 = vmatpush1.bf16.msra.mxu0 %v714
    %937 = vmatprep.subr.bf16.mxu0 %v719
    %938 = vmatpush1.bf16.msra.mxu0 %v718
    %939 = vmatprep.subr.bf16.mxu0 %v723
    %940 = vmatpush1.bf16.msra.mxu0 %v722
    %941 = vmatprep.subr.bf16.mxu0 %v727
    %942 = vmatpush1.bf16.msra.mxu0 %v726
    %943 = vmatprep.subr.bf16.mxu0 %v731
    %944 = vmatpush1.bf16.msra.mxu0 %v730
    %945 = vmatprep.subr.bf16.mxu0 %v735
    %946 = vmatpush1.bf16.msra.mxu0 %v734
    %947 = vmatprep.subr.bf16.mxu0 %v739
    %948 = vmatpush1.bf16.msra.mxu0 %v738
    %949 = vmatprep.subr.bf16.mxu0 %v743
    %950 = vmatpush1.bf16.msra.mxu0 %v742
    %951 = vmatprep.subr.bf16.mxu0 %v747
    %952 = vmatpush1.bf16.msra.mxu0 %v746
    %953 = vmatprep.subr.bf16.mxu0 %v751
    %954 = vmatpush1.bf16.msra.mxu0 %v750
    %955 = vmatprep.mubr.bf16.mxu0 %v91
    %956 = vmatmul.mubr.bf16.gmra.mrb[0].mxu0 %v90
    %v957 = vpop.f32.mrb[0].mxu0
    %v958 = vadd.f32 %v917, %v957
    %v959 = vpop.f32.mrb[0].mxu0
    %v960 = vadd.f32 %v919, %v959
    %v961 = vpop.f32.mrb[0].mxu0
    %v962 = vpop.f32.mrb[0].mxu0
    %963 = vdwg.mxu0
    %964 = vmatprep.subr.bf16.mxu0 %v629
    %965 = vmatpush1.bf16.msra.mxu0 %v628
    %966 = vmatprep.subr.bf16.mxu0 %v633
    %967 = vmatpush1.bf16.msra.mxu0 %v632
    %968 = vmatprep.subr.bf16.mxu0 %v637
    %969 = vmatpush1.bf16.msra.mxu0 %v636
    %970 = vmatprep.subr.bf16.mxu0 %v641
    %971 = vmatpush1.bf16.msra.mxu0 %v640
    %972 = vmatprep.subr.bf16.mxu0 %v645
    %973 = vmatpush1.bf16.msra.mxu0 %v644
    %974 = vmatprep.subr.bf16.mxu0 %v649
    %975 = vmatpush1.bf16.msra.mxu0 %v648
    %976 = vmatprep.subr.bf16.mxu0 %v653
    %977 = vmatpush1.bf16.msra.mxu0 %v652
    %978 = vmatprep.subr.bf16.mxu0 %v657
    %979 = vmatpush1.bf16.msra.mxu0 %v656
    %980 = vmatprep.subr.bf16.mxu0 %v661
    %981 = vmatpush1.bf16.msra.mxu0 %v660
    %982 = vmatprep.subr.bf16.mxu0 %v665
    %983 = vmatpush1.bf16.msra.mxu0 %v664
    %984 = vmatprep.subr.bf16.mxu0 %v669
    %985 = vmatpush1.bf16.msra.mxu0 %v668
    %986 = vmatprep.subr.bf16.mxu0 %v673
    %987 = vmatpush1.bf16.msra.mxu0 %v672
    %988 = vmatprep.subr.bf16.mxu0 %v677
    %989 = vmatpush1.bf16.msra.mxu0 %v676
    %990 = vmatprep.subr.bf16.mxu0 %v681
    %991 = vmatpush1.bf16.msra.mxu0 %v680
    %992 = vmatprep.subr.bf16.mxu0 %v685
    %993 = vmatpush1.bf16.msra.mxu0 %v684
    %994 = vmatprep.subr.bf16.mxu0 %v689
    %995 = vmatpush1.bf16.msra.mxu0 %v688
    %996 = vmatprep.mubr.bf16.mxu0 %v89
    %997 = vmatmul.mubr.bf16.gmra.mrb[0].mxu0 %v88
    %v998 = vpop.f32.mrb[0].mxu0
    %v999 = vadd.f32 %v233, %v998
    %v1000 = vpop.f32.mrb[0].mxu0
    %v1001 = vadd.f32 %v237, %v1000
    %v1002 = vpop.f32.mrb[0].mxu0
    %v1003 = vpop.f32.mrb[0].mxu0
    %1004 = vdwg.mxu0
    %1005 = vmatprep.subr.bf16.mxu0 %v693
    %1006 = vmatpush1.bf16.msra.mxu0 %v692
    %1007 = vmatprep.subr.bf16.mxu0 %v697
    %1008 = vmatpush1.bf16.msra.mxu0 %v696
    %1009 = vmatprep.subr.bf16.mxu0 %v701
    %1010 = vmatpush1.bf16.msra.mxu0 %v700
    %1011 = vmatprep.subr.bf16.mxu0 %v705
    %1012 = vmatpush1.bf16.msra.mxu0 %v704
    %1013 = vmatprep.subr.bf16.mxu0 %v709
    %1014 = vmatpush1.bf16.msra.mxu0 %v708
    %1015 = vmatprep.subr.bf16.mxu0 %v713
    %1016 = vmatpush1.bf16.msra.mxu0 %v712
    %1017 = vmatprep.subr.bf16.mxu0 %v717
    %1018 = vmatpush1.bf16.msra.mxu0 %v716
    %1019 = vmatprep.subr.bf16.mxu0 %v721
    %1020 = vmatpush1.bf16.msra.mxu0 %v720
    %1021 = vmatprep.subr.bf16.mxu0 %v725
    %1022 = vmatpush1.bf16.msra.mxu0 %v724
    %1023 = vmatprep.subr.bf16.mxu0 %v729
    %1024 = vmatpush1.bf16.msra.mxu0 %v728
    %1025 = vmatprep.subr.bf16.mxu0 %v733
    %1026 = vmatpush1.bf16.msra.mxu0 %v732
    %1027 = vmatprep.subr.bf16.mxu0 %v737
    %1028 = vmatpush1.bf16.msra.mxu0 %v736
    %1029 = vmatprep.subr.bf16.mxu0 %v741
    %1030 = vmatpush1.bf16.msra.mxu0 %v740
    %1031 = vmatprep.subr.bf16.mxu0 %v745
    %1032 = vmatpush1.bf16.msra.mxu0 %v744
    %1033 = vmatprep.subr.bf16.mxu0 %v749
    %1034 = vmatpush1.bf16.msra.mxu0 %v748
    %1035 = vmatprep.subr.bf16.mxu0 %v753
    %1036 = vmatpush1.bf16.msra.mxu0 %v752
    %1037 = vmatprep.mubr.bf16.mxu0 %v91
    %1038 = vmatmul.mubr.bf16.gmra.mrb[0].mxu0 %v90
    %v1039 = vpop.f32.mrb[0].mxu0
    %v1040 = vadd.f32 %v999, %v1039
    %v1041 = vpop.f32.mrb[0].mxu0
    %v1042 = vadd.f32 %v1001, %v1041
    %v1043 = vpop.f32.mrb[0].mxu0
    %v1044 = vpop.f32.mrb[0].mxu0
    %1045 = vdwg.mxu0
    %v1046 = vtanh.pop %v958
    %v1047 = vtanh.pop %v960
    %v1048 = vtanh.pop %v1040
    %v1049 = vtanh.pop %v1042
    %v1050 = vld [vmem:[#allocation8] sm:$0xf]
    %v1051 = vld [vmem:[#allocation8 + $0x4] sm:$0xf]
    %v1052 = vld [vmem:[#allocation8 + $0x8] sm:$0xf]
    %v1053 = vld [vmem:[#allocation8 + $0xc] sm:$0xf]
    %v1054 = vld [vmem:[#allocation8 + $0x10] sm:$0xf]
    %v1055 = vld [vmem:[#allocation8 + $0x14] sm:$0xf]
    %v1056 = vld [vmem:[#allocation8 + $0x18] sm:$0xf]
    %v1057 = vld [vmem:[#allocation8 + $0x1c] sm:$0xf]
    %v1058 = vld [vmem:[#allocation8 + $0x20] sm:$0xf]
    %v1059 = vld [vmem:[#allocation8 + $0x24] sm:$0xf]
    %v1060 = vld [vmem:[#allocation8 + $0x28] sm:$0xf]
    %v1061 = vld [vmem:[#allocation8 + $0x2c] sm:$0xf]
    %v1062 = vld [vmem:[#allocation8 + $0x30] sm:$0xf]
    %v1063 = vld [vmem:[#allocation8 + $0x34] sm:$0xf]
    %v1064 = vld [vmem:[#allocation8 + $0x38] sm:$0xf]
    %v1065 = vld [vmem:[#allocation8 + $0x3c] sm:$0xf]
    %v1066 = vld [vmem:[#allocation8 + $0x40] sm:$0xf]
    %v1067 = vld [vmem:[#allocation8 + $0x44] sm:$0xf]
    %v1068 = vld [vmem:[#allocation8 + $0x48] sm:$0xf]
    %v1069 = vld [vmem:[#allocation8 + $0x4c] sm:$0xf]
    %v1070 = vld [vmem:[#allocation8 + $0x50] sm:$0xf]
    %v1071 = vld [vmem:[#allocation8 + $0x54] sm:$0xf]
    %v1072 = vld [vmem:[#allocation8 + $0x58] sm:$0xf]
    %v1073 = vld [vmem:[#allocation8 + $0x5c] sm:$0xf]
    %v1074 = vld [vmem:[#allocation8 + $0x60] sm:$0xf]
    %v1075 = vld [vmem:[#allocation8 + $0x64] sm:$0xf]
    %v1076 = vld [vmem:[#allocation8 + $0x68] sm:$0xf]
    %v1077 = vld [vmem:[#allocation8 + $0x6c] sm:$0xf]
    %v1078 = vld [vmem:[#allocation8 + $0x70] sm:$0xf]
    %v1079 = vld [vmem:[#allocation8 + $0x74] sm:$0xf]
    %v1080 = vld [vmem:[#allocation8 + $0x78] sm:$0xf]
    %v1081 = vld [vmem:[#allocation8 + $0x7c] sm:$0xf]
    %v1082 = vld [vmem:[#allocation8 + $0x80] sm:$0xf]
    %v1083 = vld [vmem:[#allocation8 + $0x84] sm:$0xf]
    %v1084 = vld [vmem:[#allocation8 + $0x88] sm:$0xf]
    %v1085 = vld [vmem:[#allocation8 + $0x8c] sm:$0xf]
    %v1086 = vld [vmem:[#allocation8 + $0x90] sm:$0xf]
    %v1087 = vld [vmem:[#allocation8 + $0x94] sm:$0xf]
    %v1088 = vld [vmem:[#allocation8 + $0x98] sm:$0xf]
    %v1089 = vld [vmem:[#allocation8 + $0x9c] sm:$0xf]
    %v1090 = vld [vmem:[#allocation8 + $0xa0] sm:$0xf]
    %v1091 = vld [vmem:[#allocation8 + $0xa4] sm:$0xf]
    %v1092 = vld [vmem:[#allocation8 + $0xa8] sm:$0xf]
    %v1093 = vld [vmem:[#allocation8 + $0xac] sm:$0xf]
    %v1094 = vld [vmem:[#allocation8 + $0xb0] sm:$0xf]
    %v1095 = vld [vmem:[#allocation8 + $0xb4] sm:$0xf]
    %v1096 = vld [vmem:[#allocation8 + $0xb8] sm:$0xf]
    %v1097 = vld [vmem:[#allocation8 + $0xbc] sm:$0xf]
    %v1098 = vld [vmem:[#allocation8 + $0xc0] sm:$0xf]
    %v1099 = vld [vmem:[#allocation8 + $0xc4] sm:$0xf]
    %v1100 = vld [vmem:[#allocation8 + $0xc8] sm:$0xf]
    %v1101 = vld [vmem:[#allocation8 + $0xcc] sm:$0xf]
    %v1102 = vld [vmem:[#allocation8 + $0xd0] sm:$0xf]
    %v1103 = vld [vmem:[#allocation8 + $0xd4] sm:$0xf]
    %v1104 = vld [vmem:[#allocation8 + $0xd8] sm:$0xf]
    %v1105 = vld [vmem:[#allocation8 + $0xdc] sm:$0xf]
    %v1106 = vld [vmem:[#allocation8 + $0xe0] sm:$0xf]
    %v1107 = vld [vmem:[#allocation8 + $0xe4] sm:$0xf]
    %v1108 = vld [vmem:[#allocation8 + $0xe8] sm:$0xf]
    %v1109 = vld [vmem:[#allocation8 + $0xec] sm:$0xf]
    %v1110 = vld [vmem:[#allocation8 + $0xf0] sm:$0xf]
    %v1111 = vld [vmem:[#allocation8 + $0xf4] sm:$0xf]
    %v1112 = vld [vmem:[#allocation8 + $0xf8] sm:$0xf]
    %v1113 = vld [vmem:[#allocation8 + $0xfc] sm:$0xf]
    %v1114 = vunpack.c.l.bf16 %v1050
    %v1115 = vunpack.c.l.bf16 %v1051
    %v1116 = vunpack.c.l.bf16 %v1052
    %v1117 = vunpack.c.l.bf16 %v1053
    %v1118 = vunpack.c.l.bf16 %v1054
    %v1119 = vunpack.c.l.bf16 %v1055
    %v1120 = vunpack.c.l.bf16 %v1056
    %v1121 = vunpack.c.l.bf16 %v1057
    %v1122 = vunpack.c.l.bf16 %v1058
    %v1123 = vunpack.c.l.bf16 %v1059
    %v1124 = vunpack.c.l.bf16 %v1060
    %v1125 = vunpack.c.l.bf16 %v1061
    %v1126 = vunpack.c.l.bf16 %v1062
    %v1127 = vunpack.c.l.bf16 %v1063
    %v1128 = vunpack.c.l.bf16 %v1064
    %v1129 = vunpack.c.l.bf16 %v1065
    %v1130 = vunpack.c.l.bf16 %v1066
    %v1131 = vunpack.c.l.bf16 %v1067
    %v1132 = vunpack.c.l.bf16 %v1068
    %v1133 = vunpack.c.l.bf16 %v1069
    %v1134 = vunpack.c.l.bf16 %v1070
    %v1135 = vunpack.c.l.bf16 %v1071
    %v1136 = vunpack.c.l.bf16 %v1072
    %v1137 = vunpack.c.l.bf16 %v1073
    %v1138 = vunpack.c.l.bf16 %v1074
    %v1139 = vunpack.c.l.bf16 %v1075
    %v1140 = vunpack.c.l.bf16 %v1076
    %v1141 = vunpack.c.l.bf16 %v1077
    %v1142 = vunpack.c.l.bf16 %v1078
    %v1143 = vunpack.c.l.bf16 %v1079
    %v1144 = vunpack.c.l.bf16 %v1080
    %v1145 = vunpack.c.l.bf16 %v1081
    %v1146 = vunpack.c.l.bf16 %v1082
    %v1147 = vunpack.c.l.bf16 %v1083
    %v1148 = vunpack.c.l.bf16 %v1084
    %v1149 = vunpack.c.l.bf16 %v1085
    %v1150 = vunpack.c.l.bf16 %v1086
    %v1151 = vunpack.c.l.bf16 %v1087
    %v1152 = vunpack.c.l.bf16 %v1088
    %v1153 = vunpack.c.l.bf16 %v1089
    %v1154 = vunpack.c.l.bf16 %v1090
    %v1155 = vunpack.c.l.bf16 %v1091
    %v1156 = vunpack.c.l.bf16 %v1092
    %v1157 = vunpack.c.l.bf16 %v1093
    %v1158 = vunpack.c.l.bf16 %v1094
    %v1159 = vunpack.c.l.bf16 %v1095
    %v1160 = vunpack.c.l.bf16 %v1096
    %v1161 = vunpack.c.l.bf16 %v1097
    %v1162 = vunpack.c.l.bf16 %v1098
    %v1163 = vunpack.c.l.bf16 %v1099
    %v1164 = vunpack.c.l.bf16 %v1100
    %v1165 = vunpack.c.l.bf16 %v1101
    %v1166 = vunpack.c.l.bf16 %v1102
    %v1167 = vunpack.c.l.bf16 %v1103
    %v1168 = vunpack.c.l.bf16 %v1104
    %v1169 = vunpack.c.l.bf16 %v1105
    %v1170 = vunpack.c.l.bf16 %v1106
    %v1171 = vunpack.c.l.bf16 %v1107
    %v1172 = vunpack.c.l.bf16 %v1108
    %v1173 = vunpack.c.l.bf16 %v1109
    %v1174 = vunpack.c.l.bf16 %v1110
    %v1175 = vunpack.c.l.bf16 %v1111
    %v1176 = vunpack.c.l.bf16 %v1112
    %v1177 = vunpack.c.l.bf16 %v1113
    %v1178 = vld [vmem:[%s4] sm:$0x1]
    %v1180 = vlaneseq
    %v1181 = vshrl.u32 %v1180, 7
    %v1182 = vsub.s32 0, %v1181
    %v1183 = vrot.slane %v1178, %v1182
    %1185 = vmatprep.subr.mxu0 0.0
    %1186 = vmatpush1.msra.mxu0 %v1114
    %1187 = vmatprep.subr.mxu0 0.0
    %1188 = vmatpush1.msra.mxu0 %v1115
    %1189 = vmatprep.subr.mxu0 0.0
    %1190 = vmatpush1.msra.mxu0 %v1116
    %1191 = vmatprep.subr.mxu0 0.0
    %1192 = vmatpush1.msra.mxu0 %v1117
    %1193 = vmatprep.subr.mxu0 0.0
    %1194 = vmatpush1.msra.mxu0 %v1118
    %1195 = vmatprep.subr.mxu0 0.0
    %1196 = vmatpush1.msra.mxu0 %v1119
    %1197 = vmatprep.subr.mxu0 0.0
    %1198 = vmatpush1.msra.mxu0 %v1120
    %1199 = vmatprep.subr.mxu0 0.0
    %1200 = vmatpush1.msra.mxu0 %v1121
    %1201 = vmatprep.subr.mxu0 0.0
    %1202 = vmatpush1.msra.mxu0 %v1122
    %1203 = vmatprep.subr.mxu0 0.0
    %1204 = vmatpush1.msra.mxu0 %v1123
    %1205 = vmatprep.subr.mxu0 0.0
    %1206 = vmatpush1.msra.mxu0 %v1124
    %1207 = vmatprep.subr.mxu0 0.0
    %1208 = vmatpush1.msra.mxu0 %v1125
    %1209 = vmatprep.subr.mxu0 0.0
    %1210 = vmatpush1.msra.mxu0 %v1126
    %1211 = vmatprep.subr.mxu0 0.0
    %1212 = vmatpush1.msra.mxu0 %v1127
    %1213 = vmatprep.subr.mxu0 0.0
    %1214 = vmatpush1.msra.mxu0 %v1128
    %1215 = vmatprep.subr.mxu0 0.0
    %1216 = vmatpush1.msra.mxu0 %v1129
    %1217 = vmatprep.subr.mxu0 0.0
    %1218 = vmatpush1.msra.mxu0 %v1130
    %1219 = vmatprep.subr.mxu0 0.0
    %1220 = vmatpush1.msra.mxu0 %v1131
    %1221 = vmatprep.subr.mxu0 0.0
    %1222 = vmatpush1.msra.mxu0 %v1132
    %1223 = vmatprep.subr.mxu0 0.0
    %1224 = vmatpush1.msra.mxu0 %v1133
    %1225 = vmatprep.subr.mxu0 0.0
    %1226 = vmatpush1.msra.mxu0 %v1134
    %1227 = vmatprep.subr.mxu0 0.0
    %1228 = vmatpush1.msra.mxu0 %v1135
    %1229 = vmatprep.subr.mxu0 0.0
    %1230 = vmatpush1.msra.mxu0 %v1136
    %1231 = vmatprep.subr.mxu0 0.0
    %1232 = vmatpush1.msra.mxu0 %v1137
    %1233 = vmatprep.subr.mxu0 0.0
    %1234 = vmatpush1.msra.mxu0 %v1138
    %1235 = vmatprep.subr.mxu0 0.0
    %1236 = vmatpush1.msra.mxu0 %v1139
    %1237 = vmatprep.subr.mxu0 0.0
    %1238 = vmatpush1.msra.mxu0 %v1140
    %1239 = vmatprep.subr.mxu0 0.0
    %1240 = vmatpush1.msra.mxu0 %v1141
    %1241 = vmatprep.subr.mxu0 0.0
    %1242 = vmatpush1.msra.mxu0 %v1142
    %1243 = vmatprep.subr.mxu0 0.0
    %1244 = vmatpush1.msra.mxu0 %v1143
    %1245 = vmatprep.subr.mxu0 0.0
    %1246 = vmatpush1.msra.mxu0 %v1144
    %1247 = vmatprep.subr.mxu0 0.0
    %1248 = vmatpush1.msra.mxu0 %v1145
    %1249 = vmatprep.mubr.f32.mxu0 %v1047
    %1250 = vmatmul.mubr.f32.gmra.mrb[0].mxu0 %v1046
    %v1251 = vpop.f32.mrb[0].mxu0
    %v1252 = vadd.f32 %v1183, %v1251
    %v1253 = vpop.f32.mrb[0].mxu0
    %1254 = vdwg.mxu0
    %1255 = vmatprep.subr.mxu0 0.0
    %1256 = vmatpush1.msra.mxu0 %v1146
    %1257 = vmatprep.subr.mxu0 0.0
    %1258 = vmatpush1.msra.mxu0 %v1147
    %1259 = vmatprep.subr.mxu0 0.0
    %1260 = vmatpush1.msra.mxu0 %v1148
    %1261 = vmatprep.subr.mxu0 0.0
    %1262 = vmatpush1.msra.mxu0 %v1149
    %1263 = vmatprep.subr.mxu0 0.0
    %1264 = vmatpush1.msra.mxu0 %v1150
    %1265 = vmatprep.subr.mxu0 0.0
    %1266 = vmatpush1.msra.mxu0 %v1151
    %1267 = vmatprep.subr.mxu0 0.0
    %1268 = vmatpush1.msra.mxu0 %v1152
    %1269 = vmatprep.subr.mxu0 0.0
    %1270 = vmatpush1.msra.mxu0 %v1153
    %1271 = vmatprep.subr.mxu0 0.0
    %1272 = vmatpush1.msra.mxu0 %v1154
    %1273 = vmatprep.subr.mxu0 0.0
    %1274 = vmatpush1.msra.mxu0 %v1155
    %1275 = vmatprep.subr.mxu0 0.0
    %1276 = vmatpush1.msra.mxu0 %v1156
    %1277 = vmatprep.subr.mxu0 0.0
    %1278 = vmatpush1.msra.mxu0 %v1157
    %1279 = vmatprep.subr.mxu0 0.0
    %1280 = vmatpush1.msra.mxu0 %v1158
    %1281 = vmatprep.subr.mxu0 0.0
    %1282 = vmatpush1.msra.mxu0 %v1159
    %1283 = vmatprep.subr.mxu0 0.0
    %1284 = vmatpush1.msra.mxu0 %v1160
    %1285 = vmatprep.subr.mxu0 0.0
    %1286 = vmatpush1.msra.mxu0 %v1161
    %1287 = vmatprep.subr.mxu0 0.0
    %1288 = vmatpush1.msra.mxu0 %v1162
    %1289 = vmatprep.subr.mxu0 0.0
    %1290 = vmatpush1.msra.mxu0 %v1163
    %1291 = vmatprep.subr.mxu0 0.0
    %1292 = vmatpush1.msra.mxu0 %v1164
    %1293 = vmatprep.subr.mxu0 0.0
    %1294 = vmatpush1.msra.mxu0 %v1165
    %1295 = vmatprep.subr.mxu0 0.0
    %1296 = vmatpush1.msra.mxu0 %v1166
    %1297 = vmatprep.subr.mxu0 0.0
    %1298 = vmatpush1.msra.mxu0 %v1167
    %1299 = vmatprep.subr.mxu0 0.0
    %1300 = vmatpush1.msra.mxu0 %v1168
    %1301 = vmatprep.subr.mxu0 0.0
    %1302 = vmatpush1.msra.mxu0 %v1169
    %1303 = vmatprep.subr.mxu0 0.0
    %1304 = vmatpush1.msra.mxu0 %v1170
    %1305 = vmatprep.subr.mxu0 0.0
    %1306 = vmatpush1.msra.mxu0 %v1171
    %1307 = vmatprep.subr.mxu0 0.0
    %1308 = vmatpush1.msra.mxu0 %v1172
    %1309 = vmatprep.subr.mxu0 0.0
    %1310 = vmatpush1.msra.mxu0 %v1173
    %1311 = vmatprep.subr.mxu0 0.0
    %1312 = vmatpush1.msra.mxu0 %v1174
    %1313 = vmatprep.subr.mxu0 0.0
    %1314 = vmatpush1.msra.mxu0 %v1175
    %1315 = vmatprep.subr.mxu0 0.0
    %1316 = vmatpush1.msra.mxu0 %v1176
    %1317 = vmatprep.subr.mxu0 0.0
    %1318 = vmatpush1.msra.mxu0 %v1177
    %1319 = vmatprep.mubr.f32.mxu0 %v1049
    %1320 = vmatmul.mubr.f32.gmra.mrb[0].mxu0 %v1048
    %v1321 = vpop.f32.mrb[0].mxu0
    %v1322 = vadd.f32 %v1252, %v1321
    %v1323 = vpop.f32.mrb[0].mxu0
    %1324 = vdwg.mxu0
    %1325 = vst [vmem:[#allocation3] sm:$0xff] %v1322
    %s1326 = smul.addr %s48, 16
    %s1327 = scalar_lea.hbm %s5, %s1326
    // Predicated region
    $region26: #{tpu_custom_call.1} parent=1 // pred_check
      _
    $region27: #{tpu_custom_call.1} parent=1 // pred_check_branch
      %1329 = sbr.rel target = $region29
    $region28: #{tpu_custom_call.1} parent=1 // pred_region
      %1330 = sst [smem:[#allocation14]] [#allocation13]
      %1331 = sst [smem:[#allocation15]] [#allocation12]
    $region29: #{tpu_custom_call.1} parent=1 // pred_fallthru
      _
    %1333 = shalt.err (0)
    %s1335 = sshll.u32 [#allocation3], 4
    %s1336 = int_to_ptr.vmem [resolvable:$true] %s1335
    %1338 = dma.vmem_to_hbm [thread:$0]  %s1336, 128, %s1327, [#allocation5]
    %s1339 = smul.u32 8, 1
    %s1340 = sshll.u32 %s1339, 4
    %1341 = dma.done [#allocation5], %s1340
    %1342 = vsyncpa [#allocation7], 1
    %1343 = vsyncpa [#allocation9], 1
  %1344 = vsyncmov [#allocation4]
  %s1345 = vpop.sfrf %1344
  %p1346 = scmp.eq.s32.totalorder %s1345, 0
  %p1347 = pneg %p1346
  %1349 = shalt.err (%p1347)
  %1350 = vsyncmov [#allocation5]
  %s1351 = vpop.sfrf %1350
  %p1352 = scmp.eq.s32.totalorder %s1351, 0
  %p1353 = pneg %p1352
  %1355 = shalt.err (%p1353)

</llo_original>
